<compile_context>
chip_gen: v7x
topology: tpu7x:2x2x1
jax: 0.10.0
libtpu: 0.0.40
codegen_flags: <defaults>
</compile_context>

<pallas_src>
import functools

import jax
import jax.numpy as jnp
from jax.experimental import pallas as pl
from jax.experimental.pallas import tpu as pltpu


def _round_up(n, m):
    return ((n + m - 1) // m) * m


def _default_tile(B):
    """Pick a lane-tile: big enough to hide per-step overhead, small enough to
    (a) keep >= 2 grid steps when B allows (v7x dual TensorCore) and
    (b) keep double-buffered VMEM comfortably under per-generation limits."""
    target = 32768                                  # ~1 MiB/tile of (1, BT) f32 I/O
    half = _round_up(-(-B // 2), 128)               # ceil(B/2) rounded to lane multiple
    return max(128, min(target, half))


def mlp_kernel(x_ref, w2_ref, p_ref, o_ref, *, bf16_layer2):
    # x_ref: (1, BT)   w2_ref: (16, 16)  (torch (out, in) layout)
    # p_ref: (16, 8) slab: col0=w1, col1=b1, col2=b2, col3=w3(=torch W3.T), [0,4]=b3
    x = x_ref[...]                                   # (1, BT)
    p = p_ref[...]                                   # (16, 8) - tiny, VMEM resident
    w1 = p[:, 0:1]                                   # (16, 1)
    b1 = p[:, 1:2]
    b2 = p[:, 2:3]
    w3 = p[:, 3:4]
    b3 = p[0:1, 4:5]                                 # (1, 1)

    # Layer 1: Linear(1, 16) == outer product; K=1 so keep it on the VPU.
    h1 = jnp.maximum(w1 * x + b1, 0.0)               # (16, BT) f32

    # Layer 2: Linear(16, 16) on the MXU (f32 accumulate).  bf16 inputs pack
    # 16 sublanes into one vreg -> half the vmatmul pushes (the critical unit
    # at large B) at ~1e-3 relative cost; exact f32 path kept for parity.
    w2 = w2_ref[...]
    if bf16_layer2:
        h2 = jnp.dot(w2.astype(jnp.bfloat16), h1.astype(jnp.bfloat16),
                     preferred_element_type=jnp.float32)
    else:
        h2 = jnp.dot(w2, h1, preferred_element_type=jnp.float32)
    h2 = jnp.maximum(h2 + b2, 0.0)                   # (16, BT) f32

    # Layer 3: Linear(16, 1).  Keep it off the shared vector-extended slots:
    # VPU multiply, VPU add of the two 8-sublane halves, then ONE 8->1
    # sublane collapse (instead of a 16-deep XLU reduction).
    prod = w3 * h2                                   # (16, BT)  VPU
    partial = prod[0:8, :] + prod[8:16, :]           # (8, BT)   VPU (vreg add)
    y = jnp.sum(partial, axis=0, keepdims=True) + b3 # (1, BT)   single small collapse
    o_ref[...] = y.astype(o_ref.dtype)


def _pack_small_params(params):
    """Pack w1/b1/b2/w3/b3 into one (16, 8) f32 slab (VMEM resident)."""
    col = lambda a: jnp.asarray(a, jnp.float32).reshape(16, 1)
    b3col = jnp.zeros((16, 1), jnp.float32).at[0, 0].set(
        jnp.asarray(params["b3"], jnp.float32).reshape(()))
    return jnp.concatenate(
        [col(params["w1"]), col(params["b1"]), col(params["b2"]),
         col(params["w3"].reshape(16)), b3col, jnp.zeros((16, 3), jnp.float32)],
        axis=1)                                      # (16, 8)


def mynet_forward(x, params, *, b_tile=None, bf16_layer2=True):
    """x: (B, 1) float32.  params: PyTorch layouts (see init_params)."""
    B = x.shape[0]
    if b_tile is None:
        b_tile = _default_tile(B)
    b_pad = _round_up(max(B, 1), b_tile)

    # Batch-on-lanes layout: (B, 1) -> (1, B), pad lanes to a tile multiple.
    x_t = x.reshape(1, B).astype(jnp.float32)
    if b_pad != B:
        x_t = jnp.pad(x_t, ((0, 0), (0, b_pad - B)))

    w2 = jnp.asarray(params["w2"], jnp.float32)      # (16, 16) torch (out, in)
    slab = _pack_small_params(params)                # (16, 8)

    grid = (b_pad // b_tile,)
    const = lambda i: (0, 0)                         # weights: VMEM-resident across steps

    out = pl.pallas_call(
        functools.partial(mlp_kernel, bf16_layer2=bf16_layer2),
        out_shape=jax.ShapeDtypeStruct((1, b_pad), jnp.float32),
        grid=grid,
        in_specs=[
            pl.BlockSpec((1, b_tile), lambda i: (0, i)),   # x tile (lane-dense)
            pl.BlockSpec((16, 16), const),                 # w2
            pl.BlockSpec((16, 8), const),                  # packed small params
        ],
        out_specs=pl.BlockSpec((1, b_tile), lambda i: (0, i)),
        compiler_params=pltpu.CompilerParams(
            dimension_semantics=("parallel",),             # v7x: split tiles across TCs
            vmem_limit_bytes=48 * 1024 * 1024,             # v5e default 16 MiB is too low
        ),
    )(x_t, w2, slab)

    return out[:, :B].reshape(B, 1)


def init_params(key):
    """PyTorch-style uniform(-1/sqrt(fan_in), 1/sqrt(fan_in)) init, torch layouts:
       w1 (16,1) b1 (16,)  w2 (16,16) b2 (16,)  w3 (1,16) b3 (1,)."""
    def linear_init(k, fan_in, fan_out):
        kw, kb = jax.random.split(k)
        bound = 1.0 / jnp.sqrt(float(fan_in))
        w = jax.random.uniform(kw, (fan_out, fan_in), jnp.float32, -bound, bound)
        b = jax.random.uniform(kb, (fan_out,), jnp.float32, -bound, bound)
        return w, b

    k1, k2, k3 = jax.random.split(key, 3)
    w1, b1 = linear_init(k1, 1, 16)
    w2, b2 = linear_init(k2, 16, 16)
    w3, b3 = linear_init(k3, 16, 1)
    return {"w1": w1, "b1": b1, "w2": w2, "b2": b2, "w3": w3, "b3": b3}


def mynet_ref(x, p):
    """Pure-JAX f32 reference (exact module semantics)."""
    h = jnp.maximum(x @ p["w1"].T + p["b1"], 0.0)
    h = jnp.maximum(h @ p["w2"].T + p["b2"], 0.0)
    return h @ p["w3"].T + p["b3"]


def mynet_ref_bf16(x, p):
    """Reference with the same bf16 cast on the 16x16 layer as the fast kernel."""
    h = jnp.maximum(x @ p["w1"].T + p["b1"], 0.0)
    h = jnp.maximum(
        jnp.dot(h.astype(jnp.bfloat16), p["w2"].T.astype(jnp.bfloat16),
                preferred_element_type=jnp.float32) + p["b2"], 0.0)
    return h @ p["w3"].T + p["b3"]


if __name__ == "__main__":
    key = jax.random.PRNGKey(0)
    k_params, k_x, k_x2 = jax.random.split(key, 3)
    params = init_params(k_params)

    # Small-shape checks: exact f32 path and fast bf16-layer-2 path.
    B = 8
    x = jax.random.normal(k_x, (B, 1), dtype=jnp.float32)

    out_exact = jax.block_until_ready(mynet_forward(x, params, bf16_layer2=False))
    out_fast = jax.block_until_ready(mynet_forward(x, params))          # default: bf16 layer 2
    ref = mynet_ref(x, params)

    assert out_exact.shape == (B, 1)
    assert jnp.allclose(out_exact, ref, atol=1e-5, rtol=1e-5), "exact path mismatch"
    assert jnp.allclose(out_fast, mynet_ref_bf16(x, params), atol=1e-4, rtol=1e-4), \
        "bf16 path mismatch vs bf16 reference"
    assert jnp.allclose(out_fast, ref, atol=5e-2, rtol=5e-2), "bf16 path drifted too far"

    # Multi-tile path: exercises padding, grid > 1 and the v7x dual-core split.
    B2 = 300
    x2 = jax.random.normal(k_x2, (B2, 1), dtype=jnp.float32)
    out2 = jax.block_until_ready(mynet_forward(x2, params))
    assert out2.shape == (B2, 1)
    assert jnp.allclose(out2, mynet_ref_bf16(x2, params), atol=1e-4, rtol=1e-4), \
        "multi-tile mismatch"

    print("KERNEL_OK")
</pallas_src>

<mosaic_0001>
module attributes {stable_mosaic.version = 11 : i64} {
  func.func @mlp_kernel(%arg0: i32, %arg1: memref<1x128xf32, #tpu.memory_space<vmem>>, %arg2: memref<16x16xf32, #tpu.memory_space<vmem>>, %arg3: memref<16x8xf32, #tpu.memory_space<vmem>>, %arg4: memref<1x128xf32, #tpu.memory_space<vmem>>) attributes {dimension_semantics = [#tpu.dimension_semantics<parallel>], iteration_bounds = array<i64: 1>, scalar_prefetch = 0 : i64, scratch_operands = 0 : i64, tpu.core_type = #tpu.core_type<tc>, window_params = [{transform_indices = @transform_0, window_bounds = array<i64: 1, 128>}, {pipeline_mode = #tpu.pipeline_mode<synchronous>, transform_indices = @transform_1, window_bounds = array<i64: 16, 16>}, {pipeline_mode = #tpu.pipeline_mode<synchronous>, transform_indices = @transform_2, window_bounds = array<i64: 16, 8>}, {transform_indices = @transform_3, window_bounds = array<i64: 1, 128>}]} {
    %c0 = arith.constant 0 : index
    %c0_0 = arith.constant 0 : index
    %0 = vector.load %arg1[%c0, %c0_0] : memref<1x128xf32, #tpu.memory_space<vmem>>, vector<1x128xf32>
    %c0_1 = arith.constant 0 : index
    %c0_2 = arith.constant 0 : index
    %1 = vector.load %arg3[%c0_1, %c0_2] : memref<16x8xf32, #tpu.memory_space<vmem>>, vector<16x8xf32>
    %2 = vector.extract_strided_slice %1 {offsets = [0, 0], sizes = [16, 1], strides = [1, 1]} : vector<16x8xf32> to vector<16x1xf32>
    %3 = vector.extract_strided_slice %1 {offsets = [0, 1], sizes = [16, 1], strides = [1, 1]} : vector<16x8xf32> to vector<16x1xf32>
    %4 = vector.extract_strided_slice %1 {offsets = [0, 2], sizes = [16, 1], strides = [1, 1]} : vector<16x8xf32> to vector<16x1xf32>
    %5 = vector.extract_strided_slice %1 {offsets = [0, 3], sizes = [16, 1], strides = [1, 1]} : vector<16x8xf32> to vector<16x1xf32>
    %6 = vector.extract_strided_slice %1 {offsets = [0, 4], sizes = [1, 1], strides = [1, 1]} : vector<16x8xf32> to vector<1x1xf32>
    %7 = vector.broadcast %2 : vector<16x1xf32> to vector<16x128xf32>
    %8 = vector.broadcast %0 : vector<1x128xf32> to vector<16x128xf32>
    %9 = arith.mulf %7, %8 : vector<16x128xf32>
    %10 = vector.broadcast %3 : vector<16x1xf32> to vector<16x128xf32>
    %11 = arith.addf %9, %10 : vector<16x128xf32>
    %cst = arith.constant 0.000000e+00 : f32
    %12 = vector.broadcast %cst : f32 to vector<16x128xf32>
    %13 = arith.maximumf %11, %12 : vector<16x128xf32>
    %c0_3 = arith.constant 0 : index
    %c0_4 = arith.constant 0 : index
    %14 = vector.load %arg2[%c0_3, %c0_4] : memref<16x16xf32, #tpu.memory_space<vmem>>, vector<16x16xf32>
    %cst_5 = arith.constant dense<0.000000e+00> : vector<16x128xf32>
    %15 = tpu.matmul %14, %13, %cst_5 {dimension_numbers = #tpu.dot_dimension_numbers<[1], [0], [0], [1], [0, 0, 1, 1], [], []>} : vector<16x16xf32>, vector<16x128xf32>, vector<16x128xf32> -> vector<16x128xf32>
    %16 = vector.broadcast %4 : vector<16x1xf32> to vector<16x128xf32>
    %17 = arith.addf %15, %16 : vector<16x128xf32>
    %cst_6 = arith.constant 0.000000e+00 : f32
    %18 = vector.broadcast %cst_6 : f32 to vector<16x128xf32>
    %19 = arith.maximumf %17, %18 : vector<16x128xf32>
    %20 = vector.broadcast %5 : vector<16x1xf32> to vector<16x128xf32>
    %21 = arith.mulf %20, %19 : vector<16x128xf32>
    %22 = vector.extract_strided_slice %21 {offsets = [0, 0], sizes = [8, 128], strides = [1, 1]} : vector<16x128xf32> to vector<8x128xf32>
    %23 = vector.extract_strided_slice %21 {offsets = [8, 0], sizes = [8, 128], strides = [1, 1]} : vector<16x128xf32> to vector<8x128xf32>
    %24 = arith.addf %22, %23 : vector<8x128xf32>
    %cst_7 = arith.constant dense<0.000000e+00> : vector<128xf32>
    %25 = vector.multi_reduction <add>, %24, %cst_7 [0] : vector<8x128xf32> to vector<128xf32>
    %26 = vector.shape_cast %25 : vector<128xf32> to vector<1x128xf32>
    %27 = vector.broadcast %6 : vector<1x1xf32> to vector<1x128xf32>
    %28 = arith.addf %26, %27 : vector<1x128xf32>
    %c0_8 = arith.constant 0 : index
    %c0_9 = arith.constant 0 : index
    %29 = vector.load %arg4[%c0_8, %c0_9] : memref<1x128xf32, #tpu.memory_space<vmem>>, vector<1x128xf32>
    tpu.vector_store %arg4[%c0_8, %c0_9], %28 {strides = array<i32>} : memref<1x128xf32, #tpu.memory_space<vmem>>, vector<1x128xf32>,
    return
  }
  func.func @transform_0(%arg0: i32) -> (i32, i32) {
    %c0_i32 = arith.constant 0 : i32
    %c0_i32_0 = arith.constant 0 : i32
    return %c0_i32, %arg0 : i32, i32
  }
  func.func @transform_1(%arg0: i32) -> (i32, i32) {
    %c0_i32 = arith.constant 0 : i32
    %c0_i32_0 = arith.constant 0 : i32
    %c0_i32_1 = arith.constant 0 : i32
    return %c0_i32, %c0_i32_0 : i32, i32
  }
  func.func @transform_2(%arg0: i32) -> (i32, i32) {
    %c0_i32 = arith.constant 0 : i32
    %c0_i32_0 = arith.constant 0 : i32
    %c0_i32_1 = arith.constant 0 : i32
    return %c0_i32, %c0_i32_0 : i32, i32
  }
  func.func @transform_3(%arg0: i32) -> (i32, i32) {
    %c0_i32 = arith.constant 0 : i32
    %c0_i32_0 = arith.constant 0 : i32
    return %c0_i32, %arg0 : i32, i32
  }
}

</mosaic_0001>

<llo_original>
// kernel: tpu_custom_call.1
$region0: #{tpu_custom_call.1}
  #allocation0 [shape = 'u32[]', space=smem, size = 0x4, offset = 0x4, fixed_abs, tag = 'smem constant byte address 0x4 - core index']
  #allocation1 [shape = 'u32[144,128]{1,0:T(1,128)}', space=vmem, size = 0x12000, scoped, tag = 'internal scratch']
  %s0 = inlined_call_operand.vmem [shape: f32[1,128], index: 0, kind: input, shape index: {}]
  %s1 = inlined_call_operand.vmem [shape: f32[16,16], index: 1, kind: input, shape index: {}]
  %s2 = inlined_call_operand.vmem [shape: f32[16,8], index: 2, kind: input, shape index: {}]
  %s3 = inlined_call_operand.hbm [shape: f32[1,128], index: 3, kind: output, shape index: {}]
  %s4 = sld [smem:[#allocation0]]
  $region22: #{tpu_custom_call.1} parent=0
    _
  %s6 = ssub.s32 1, %s4
  %s7 = scalar_select 0, %s6, %s4
  $region1: #{tpu_custom_call.1} parent=0
    #allocation2 [shape = 'u8[512]{0}', space=vmem, size = 0x400, scoped, tag = 'output window, operand 0, single buffered']
    #allocation3 [shape = 's32[1]{0}', space=sflag, size = 0x4, scoped, tag = 'scoped memory for tpu_custom_call.1']
    %8 = vsyncpa [#allocation3], 0
    // Predicated region
    $region2: #{tpu_custom_call.1} parent=1 // pred_check
      _
    $region3: #{tpu_custom_call.1} parent=1 // pred_check_branch
      %10 = sbr.rel (0) target = $region5
    $region4: #{tpu_custom_call.1} parent=1 // pred_region
      _
    $region5: #{tpu_custom_call.1} parent=1 // pred_fallthru
      _
    // Predicated region
    $region6: #{tpu_custom_call.1} parent=1 // pred_check
      _
    $region7: #{tpu_custom_call.1} parent=1 // pred_check_branch
      %12 = sbr.rel (0) target = $region9
    $region8: #{tpu_custom_call.1} parent=1 // pred_region
      _
    $region9: #{tpu_custom_call.1} parent=1 // pred_fallthru
      _
    // Predicated region
    $region10: #{tpu_custom_call.1} parent=1 // pred_check
      _
    $region11: #{tpu_custom_call.1} parent=1 // pred_check_branch
      %14 = sbr.rel (0) target = $region13
    $region12: #{tpu_custom_call.1} parent=1 // pred_region
      _
    $region13: #{tpu_custom_call.1} parent=1 // pred_fallthru
      _
    %v15 = vld [vmem:[%s0] sm:$0x1]
    %v16 = vld [vmem:[%s2] sm:$0xff]
    %v17 = vld [vmem:[%s2 + $0x8] sm:$0xff]
    %19 = vset.pattern.permute.xlu0 0
    %20 = vperm.xlu0 %19, %v16
    %v21 = vpop.permute.xlu0 %20
    %24 = vset.pattern.permute.xlu0 0
    %25 = vperm.xlu0 %24, %v17
    %v26 = vpop.permute.xlu0 %25
    %v29 = vlaneseq
    %v30 = vshrl.u32 %v29, 7
    %v31 = vsub.s32 0, %v30
    %v32 = vrot.slane %v15, %v31
    %v34 = vmul.f32 %v21, %v32
    %v35 = vmul.f32 %v26, %v32
    %36 = vset.pattern.permute.xlu0 1
    %37 = vperm.xlu0 %36, %v16
    %v38 = vpop.permute.xlu0 %37
    %40 = vset.pattern.permute.xlu0 1
    %41 = vperm.xlu0 %40, %v17
    %v42 = vpop.permute.xlu0 %41
    %v44 = vadd.f32 %v34, %v38
    %v45 = vadd.f32 %v35, %v42
    %v46 = vmax.f32 %v44, 0.0
    %v47 = vmax.f32 %v45, 0.0
    %v48 = vld [vmem:[%s1] sm:$0xff]
    %v49 = vld [vmem:[%s1 + $0x8] sm:$0xff]
    %50 = vset.pattern.permute.xlu0 2
    %51 = vperm.xlu0 %50, %v16
    %v52 = vpop.permute.xlu0 %51
    %54 = vset.pattern.permute.xlu0 2
    %55 = vperm.xlu0 %54, %v17
    %v56 = vpop.permute.xlu0 %55
    %vm58 = vcmask 130048
    %v60 = vsel %vm58, %v48, 0
    %v63 = vsel %vm58, %v49, 0
    %65 = vmatprep.subr.mxu0 0.0
    %66 = vmatpush1.msra.mxu0 %v46
    %67 = vmatprep.subr.mxu0 0.0
    %68 = vmatpush1.msra.mxu0 %v47
    %69 = vmatprep.subr.mxu0 0.0
    %70 = vmatpush1.msra.mxu0 0.0
    %71 = vmatprep.subr.mxu0 0.0
    %72 = vmatpush1.msra.mxu0 0.0
    %73 = vmatprep.subr.mxu0 0.0
    %74 = vmatpush1.msra.mxu0 0.0
    %75 = vmatprep.subr.mxu0 0.0
    %76 = vmatpush1.msra.mxu0 0.0
    %77 = vmatprep.subr.mxu0 0.0
    %78 = vmatpush1.msra.mxu0 0.0
    %79 = vmatprep.subr.mxu0 0.0
    %80 = vmatpush1.msra.mxu0 0.0
    %81 = vmatprep.subr.mxu0 0.0
    %82 = vmatpush1.msra.mxu0 0.0
    %83 = vmatprep.subr.mxu0 0.0
    %84 = vmatpush1.msra.mxu0 0.0
    %85 = vmatprep.subr.mxu0 0.0
    %86 = vmatpush1.msra.mxu0 0.0
    %87 = vmatprep.subr.mxu0 0.0
    %88 = vmatpush1.msra.mxu0 0.0
    %89 = vmatprep.subr.mxu0 0.0
    %90 = vmatpush1.msra.mxu0 0.0
    %91 = vmatprep.subr.mxu0 0.0
    %92 = vmatpush1.msra.mxu0 0.0
    %93 = vmatprep.subr.mxu0 0.0
    %94 = vmatpush1.msra.mxu0 0.0
    %95 = vmatprep.subr.mxu0 0.0
    %96 = vmatpush1.msra.mxu0 0.0
    %97 = vmatprep.subr.mxu0 0.0
    %98 = vmatpush1.msra.mxu0 0.0
    %99 = vmatprep.subr.mxu0 0.0
    %100 = vmatpush1.msra.mxu0 0.0
    %101 = vmatprep.subr.mxu0 0.0
    %102 = vmatpush1.msra.mxu0 0.0
    %103 = vmatprep.subr.mxu0 0.0
    %104 = vmatpush1.msra.mxu0 0.0
    %105 = vmatprep.subr.mxu0 0.0
    %106 = vmatpush1.msra.mxu0 0.0
    %107 = vmatprep.subr.mxu0 0.0
    %108 = vmatpush1.msra.mxu0 0.0
    %109 = vmatprep.subr.mxu0 0.0
    %110 = vmatpush1.msra.mxu0 0.0
    %111 = vmatprep.subr.mxu0 0.0
    %112 = vmatpush1.msra.mxu0 0.0
    %113 = vmatprep.subr.mxu0 0.0
    %114 = vmatpush1.msra.mxu0 0.0
    %115 = vmatprep.subr.mxu0 0.0
    %116 = vmatpush1.msra.mxu0 0.0
    %117 = vmatprep.subr.mxu0 0.0
    %118 = vmatpush1.msra.mxu0 0.0
    %119 = vmatprep.subr.mxu0 0.0
    %120 = vmatpush1.msra.mxu0 0.0
    %121 = vmatprep.subr.mxu0 0.0
    %122 = vmatpush1.msra.mxu0 0.0
    %123 = vmatprep.subr.mxu0 0.0
    %124 = vmatpush1.msra.mxu0 0.0
    %125 = vmatprep.subr.mxu0 0.0
    %126 = vmatpush1.msra.mxu0 0.0
    %127 = vmatprep.subr.mxu0 0.0
    %128 = vmatpush1.msra.mxu0 0.0
    %129 = vmatprep.mubr.f32.mxu0 0.0
    %130 = vmatmul.mubr.f32.gmra.mrb[0].mxu0 %v60
    %v131 = vpop.f32.mrb[0].mxu0
    %v132 = vadd.f32 %v52, %v131
    %v133 = vpop.f32.mrb[0].mxu0
    %134 = vmatprep.mubr.f32.mxu0 0.0
    %135 = vmatmul.mubr.f32.gmra.mrb[0].mxu0 %v63
    %v136 = vpop.f32.mrb[0].mxu0
    %v137 = vadd.f32 %v56, %v136
    %v138 = vpop.f32.mrb[0].mxu0
    %139 = vdwg.mxu0
    %v140 = vmax.f32 %v132, 0.0
    %v141 = vmax.f32 %v137, 0.0
    %142 = vset.pattern.permute.xlu0 3
    %143 = vperm.xlu0 %142, %v16
    %v144 = vpop.permute.xlu0 %143
    %146 = vset.pattern.permute.xlu0 3
    %147 = vperm.xlu0 %146, %v17
    %v148 = vpop.permute.xlu0 %147
    %v150 = vmul.f32 %v144, %v140
    %v151 = vmul.f32 %v148, %v141
    %v152 = vadd.f32 %v150, %v151
    %v153 = vrot.slane %v152, 4
    %v154 = vadd.f32 %v152, %v153
    %v155 = vrot.slane %v154, 2
    %v156 = vadd.f32 %v154, %v155
    %v157 = vrot.slane %v156, 1
    %v158 = vadd.f32 %v156, %v157
    %159 = vset.pattern.permute.xlu0 4
    %160 = vperm.xlu0 %159, %v16
    %v161 = vpop.permute.xlu0 %160
    %v163 = vadd.f32 %v158, %v161
    %164 = vst [vmem:[#allocation2] sm:$0x1] %v163
    // Predicated region
    $region14: #{tpu_custom_call.1} parent=1 // pred_check
      _
    $region15: #{tpu_custom_call.1} parent=1 // pred_check_branch
      %166 = sbr.rel (0) target = $region17
    $region16: #{tpu_custom_call.1} parent=1 // pred_region
      %s168 = ssub.s32 16, 16
      %169 = vsyncadd [#allocation3], %s168
      %s171 = sshll.u32 [#allocation2], 4
      %s172 = int_to_ptr.vmem [resolvable:$true] %s171
      %174 = dma.vmem_to_hbm [thread:$0]  %s172, 16, %s3, [#allocation3]
    $region17: #{tpu_custom_call.1} parent=1 // pred_fallthru
      _
    // Predicated region
    $region18: #{tpu_custom_call.1} parent=1 // pred_check
      _
    $region19: #{tpu_custom_call.1} parent=1 // pred_check_branch
      %176 = sbr.rel (0) target = $region21
    $region20: #{tpu_custom_call.1} parent=1 // pred_region
      %177 = dma.done [#allocation3], 16
    $region21: #{tpu_custom_call.1} parent=1 // pred_fallthru
      _
    %178 = vsyncpa [#allocation3], 1

</llo_original>
